<compile_context>
chip_gen: v6e
topology: v6e:2x2x1
jax: 0.10.0
libtpu: 0.0.40
codegen_flags: <defaults>
</compile_context>

<pallas_src>
import functools

import jax
import jax.numpy as jnp
from jax.experimental import pallas as pl
from jax.experimental.pallas import tpu as pltpu


def _label_smoothing_kernel(x_ref, tgt_ref, out_ref, *, confidence, smoothing,
                            n_rows, tile_n):
    i = pl.program_id(0)

    x = x_ref[...].astype(jnp.float32)            # (TILE_N, C)
    tgt = tgt_ref[...]                            # (TILE_N, 1) int32
    c = x.shape[-1]

    # Numerically stable log-sum-exp per row (do NOT materialize logprobs).
    m = jnp.max(x, axis=-1, keepdims=True)        # (TILE_N, 1)
    shifted = x - m                               # (TILE_N, C)
    sumexp = jnp.sum(jnp.exp(shifted), axis=-1, keepdims=True)
    lse = jnp.log(sumexp)                         # (TILE_N, 1)

    # Gather shifted[row, target[row]] via one-hot mask (no dynamic gather).
    col = jax.lax.broadcasted_iota(jnp.int32, shifted.shape, 1)
    onehot = col == tgt                           # (TILE_N, C)
    gathered = jnp.sum(jnp.where(onehot, shifted, 0.0), axis=-1, keepdims=True)
    sum_shifted = jnp.sum(shifted, axis=-1, keepdims=True)

    # nll      = -(shifted[tgt] - lse) = lse - gathered
    # smooth   = -mean(shifted - lse)  = lse - sum(shifted)/C
    nll_loss = lse - gathered                     # (TILE_N, 1)
    smooth_loss = lse - sum_shifted * (1.0 / c)   # (TILE_N, 1)

    loss = confidence * nll_loss + smoothing * smooth_loss  # (TILE_N, 1)

    # Mask tail rows that fall beyond N (garbage rows of the partial block).
    row = jax.lax.broadcasted_iota(jnp.int32, loss.shape, 0) + i * tile_n
    valid = row < n_rows
    tile_sum = jnp.sum(jnp.where(valid, loss, 0.0))

    # Lane-dense 128-wide write (unmasked vst); same value in all 128 lanes,
    # the wrapper reads lane 0 of each tile's slot.
    out_ref[...] = jnp.full((1, 128), tile_sum, dtype=jnp.float32)


def label_smoothing_loss(x, target, smoothing=0.1, tile_n=None):
    """x: (N, C) float logits (f32 or bf16), target: (N,) int class ids.

    Returns scalar f32 mean label-smoothed NLL loss.
    """
    n, c = x.shape
    confidence = 1.0 - smoothing
    tgt2d = target.astype(jnp.int32).reshape(n, 1)

    itemsize = jnp.dtype(x.dtype).itemsize

    if tile_n is None:
        # Largest row tile that keeps a (TILE_N, C) f32 working set comfortably
        # inside scoped VMEM (with double buffering + compute temporaries),
        # aligned to 8 sublanes, never larger than needed to cover N.
        budget_bytes = 4 * 1024 * 1024            # per x tile (f32 compute)
        tile_n = max(8, min(1024, budget_bytes // max(1, c * 4)))
        tile_n = (tile_n // 8) * 8
    tile_n = max(8, min(tile_n, ((n + 7) // 8) * 8))
    tile_n = (tile_n // 8) * 8

    num_tiles = -(-n // tile_n)

    kernel = functools.partial(
        _label_smoothing_kernel,
        confidence=confidence,
        smoothing=smoothing,
        n_rows=n,
        tile_n=tile_n,
    )

    cost = pl.CostEstimate(
        flops=int(6 * n * c),
        transcendentals=int(n * c + n),
        bytes_accessed=int(n * c * itemsize + n * 4 + num_tiles * 128 * 4),
    )

    partials = pl.pallas_call(
        kernel,
        out_shape=jax.ShapeDtypeStruct((1, 128 * num_tiles), jnp.float32),
        grid_spec=pltpu.PrefetchScalarGridSpec(
            num_scalar_prefetch=0,
            grid=(num_tiles,),
            in_specs=[
                pl.BlockSpec((tile_n, c), lambda i: (i, 0)),
                pl.BlockSpec((tile_n, 1), lambda i: (i, 0)),
            ],
            out_specs=pl.BlockSpec((1, 128), lambda i: (0, i)),
        ),
        compiler_params=pltpu.CompilerParams(
            dimension_semantics=("parallel",),
            vmem_limit_bytes=48 * 1024 * 1024,
        ),
        cost_estimate=cost,
    )(x, tgt2d)

    # One meaningful value per tile (lane 0 of each 128-lane slot).
    per_tile = partials.reshape(num_tiles, 128)[:, 0]
    return jnp.sum(per_tile) / jnp.float32(n)


def _reference(x, target, smoothing):
    logprobs = jax.nn.log_softmax(x.astype(jnp.float32), axis=-1)
    nll = -jnp.take_along_axis(logprobs, target[:, None], axis=-1)[:, 0]
    smooth = -jnp.mean(logprobs, axis=-1)
    return jnp.mean((1.0 - smoothing) * nll + smoothing * smooth)


if __name__ == "__main__":
    key = jax.random.PRNGKey(0)
    smoothing = 0.1

    # Case 1: small single-tile case (batch=8, num_classes=32).
    k1, k2, k3, k4 = jax.random.split(key, 4)
    N, C = 8, 32
    x = jax.random.normal(k1, (N, C), dtype=jnp.float32)
    target = jax.random.randint(k2, (N,), 0, C, dtype=jnp.int32)
    loss = jax.block_until_ready(label_smoothing_loss(x, target, smoothing))
    ref = _reference(x, target, smoothing)
    assert jnp.allclose(loss, ref, atol=1e-5, rtol=1e-5), (loss, ref)

    # Case 2: multi-tile path with a masked tail (N=40 rows, TILE_N=16).
    N2, C2 = 40, 32
    x2 = jax.random.normal(k3, (N2, C2), dtype=jnp.float32)
    target2 = jax.random.randint(k4, (N2,), 0, C2, dtype=jnp.int32)
    loss2 = jax.block_until_ready(
        label_smoothing_loss(x2, target2, smoothing, tile_n=16))
    ref2 = _reference(x2, target2, smoothing)
    assert jnp.allclose(loss2, ref2, atol=1e-5, rtol=1e-5), (loss2, ref2)

    print("KERNEL_OK")
</pallas_src>

<mosaic_0001>
module attributes {stable_mosaic.version = 11 : i64} {
  func.func @_label_smoothing_kernel(%arg0: i32, %arg1: memref<8x32xf32, #tpu.memory_space<vmem>>, %arg2: memref<8x1xi32, #tpu.memory_space<vmem>>, %arg3: memref<1x128xf32, #tpu.memory_space<vmem>>) attributes {dimension_semantics = [#tpu.dimension_semantics<parallel>], iteration_bounds = array<i64: 1>, scalar_prefetch = 0 : i64, scratch_operands = 0 : i64, tpu.core_type = #tpu.core_type<tc>, window_params = [{transform_indices = @transform_0, window_bounds = array<i64: 8, 32>}, {transform_indices = @transform_1, window_bounds = array<i64: 8, 1>}, {transform_indices = @transform_2, window_bounds = array<i64: 1, 128>}]} {
    %c0 = arith.constant 0 : index
    %c0_0 = arith.constant 0 : index
    %0 = vector.load %arg1[%c0, %c0_0] : memref<8x32xf32, #tpu.memory_space<vmem>>, vector<8x32xf32>
    %c0_1 = arith.constant 0 : index
    %c0_2 = arith.constant 0 : index
    %1 = vector.load %arg2[%c0_1, %c0_2] : memref<8x1xi32, #tpu.memory_space<vmem>>, vector<8x1xi32>
    %cst = arith.constant dense<0xFF800000> : vector<8xf32>
    %2 = vector.multi_reduction <maximumf>, %0, %cst [1] : vector<8x32xf32> to vector<8xf32>
    %3 = vector.shape_cast %2 : vector<8xf32> to vector<8x1xf32>
    %4 = vector.broadcast %3 : vector<8x1xf32> to vector<8x32xf32>
    %5 = arith.subf %0, %4 : vector<8x32xf32>
    %6 = math.exp %5 : vector<8x32xf32>
    %cst_3 = arith.constant dense<0.000000e+00> : vector<8xf32>
    %7 = vector.multi_reduction <add>, %6, %cst_3 [1] : vector<8x32xf32> to vector<8xf32>
    %8 = vector.shape_cast %7 : vector<8xf32> to vector<8x1xf32>
    %9 = math.log %8 : vector<8x1xf32>
    %10 = tpu.iota {dimensions = array<i32: 1>} : vector<8x32xi32>
    %11 = vector.broadcast %1 : vector<8x1xi32> to vector<8x32xi32>
    %12 = arith.cmpi eq, %10, %11 : vector<8x32xi32>
    %cst_4 = arith.constant 0.000000e+00 : f32
    %13 = vector.broadcast %cst_4 : f32 to vector<8x32xf32>
    %14 = arith.select %12, %5, %13 : vector<8x32xi1>, vector<8x32xf32>
    %cst_5 = arith.constant dense<0.000000e+00> : vector<8xf32>
    %15 = vector.multi_reduction <add>, %14, %cst_5 [1] : vector<8x32xf32> to vector<8xf32>
    %16 = vector.shape_cast %15 : vector<8xf32> to vector<8x1xf32>
    %cst_6 = arith.constant dense<0.000000e+00> : vector<8xf32>
    %17 = vector.multi_reduction <add>, %5, %cst_6 [1] : vector<8x32xf32> to vector<8xf32>
    %18 = vector.shape_cast %17 : vector<8xf32> to vector<8x1xf32>
    %19 = arith.subf %9, %16 : vector<8x1xf32>
    %cst_7 = arith.constant 3.125000e-02 : f32
    %20 = vector.broadcast %cst_7 : f32 to vector<8x1xf32>
    %21 = arith.mulf %18, %20 : vector<8x1xf32>
    %22 = arith.subf %9, %21 : vector<8x1xf32>
    %cst_8 = arith.constant 0.899999976 : f32
    %23 = vector.broadcast %cst_8 : f32 to vector<8x1xf32>
    %24 = arith.mulf %23, %19 : vector<8x1xf32>
    %cst_9 = arith.constant 1.000000e-01 : f32
    %25 = vector.broadcast %cst_9 : f32 to vector<8x1xf32>
    %26 = arith.mulf %25, %22 : vector<8x1xf32>
    %27 = arith.addf %24, %26 : vector<8x1xf32>
    %28 = tpu.iota {dimensions = array<i32: 0>} : vector<8x1xi32>
    %c8_i32 = arith.constant 8 : i32
    %29 = arith.muli %arg0, %c8_i32 : i32
    %30 = vector.broadcast %29 : i32 to vector<8x1xi32>
    %31 = arith.addi %28, %30 : vector<8x1xi32>
    %c8_i32_10 = arith.constant 8 : i32
    %32 = vector.broadcast %c8_i32_10 : i32 to vector<8x1xi32>
    %33 = arith.cmpi slt, %31, %32 : vector<8x1xi32>
    %cst_11 = arith.constant 0.000000e+00 : f32
    %34 = vector.broadcast %cst_11 : f32 to vector<8x1xf32>
    %35 = arith.select %33, %27, %34 : vector<8x1xi1>, vector<8x1xf32>
    %36 = vector.shape_cast %35 : vector<8x1xf32> to vector<1x8x1xf32>
    %cst_12 = arith.constant dense<0.000000e+00> : vector<1xf32>
    %37 = vector.multi_reduction <add>, %36, %cst_12 [1, 2] : vector<1x8x1xf32> to vector<1xf32>
    %38 = vector.shape_cast %37 : vector<1xf32> to vector<1x1x1xf32>
    %39 = vector.extract %38[0, 0, 0] : f32 from vector<1x1x1xf32>
    %40 = vector.broadcast %39 : f32 to vector<1x128xf32>
    %c0_13 = arith.constant 0 : index
    %c0_14 = arith.constant 0 : index
    %41 = vector.load %arg3[%c0_13, %c0_14] : memref<1x128xf32, #tpu.memory_space<vmem>>, vector<1x128xf32>
    tpu.vector_store %arg3[%c0_13, %c0_14], %40 {strides = array<i32>} : memref<1x128xf32, #tpu.memory_space<vmem>>, vector<1x128xf32>,
    return
  }
  func.func @transform_0(%arg0: i32) -> (i32, i32) {
    %c0_i32 = arith.constant 0 : i32
    %c0_i32_0 = arith.constant 0 : i32
    return %arg0, %c0_i32 : i32, i32
  }
  func.func @transform_1(%arg0: i32) -> (i32, i32) {
    %c0_i32 = arith.constant 0 : i32
    %c0_i32_0 = arith.constant 0 : i32
    return %arg0, %c0_i32 : i32, i32
  }
  func.func @transform_2(%arg0: i32) -> (i32, i32) {
    %c0_i32 = arith.constant 0 : i32
    %c0_i32_0 = arith.constant 0 : i32
    return %c0_i32, %arg0 : i32, i32
  }
}

</mosaic_0001>

<llo_original>
// kernel: tpu_custom_call.1
$region0: #{tpu_custom_call.1}
  #allocation0 [shape = 'u32[]', space=smem, size = 0x4, offset = 0x4, fixed_abs, tag = 'smem constant byte address 0x4 - core index']
  #allocation1 [shape = 'u32[144,128]{1,0:T(1,128)}', space=vmem, size = 0x12000, scoped, tag = 'internal scratch']
  %s0 = inlined_call_operand.vmem [shape: f32[8,32], index: 0, kind: input, shape index: {}]
  %s1 = inlined_call_operand.vmem [shape: s32[8,1], index: 1, kind: input, shape index: {}]
  %s2 = inlined_call_operand.hbm [shape: f32[1,128], index: 2, kind: output, shape index: {}]
  %s3 = sld [smem:[#allocation0]]
  $region18: #{tpu_custom_call.1} parent=0
    _
  %s5 = ssub.s32 1, %s3
  %s6 = scalar_select 0, %s5, %s3
  $region1: #{tpu_custom_call.1} parent=0
    #allocation2 [shape = 'u8[512]{0}', space=vmem, size = 0x400, scoped, tag = 'output window, operand 0, single buffered']
    #allocation3 [shape = 's32[1]{0}', space=sflag, size = 0x4, scoped, tag = 'scoped memory for tpu_custom_call.1']
    %7 = vsyncpa [#allocation3], 0
    // Predicated region
    $region2: #{tpu_custom_call.1} parent=1 // pred_check
      _
    $region3: #{tpu_custom_call.1} parent=1 // pred_check_branch
      %9 = sbr.rel (0) target = $region5
    $region4: #{tpu_custom_call.1} parent=1 // pred_region
      _
    $region5: #{tpu_custom_call.1} parent=1 // pred_fallthru
      _
    // Predicated region
    $region6: #{tpu_custom_call.1} parent=1 // pred_check
      _
    $region7: #{tpu_custom_call.1} parent=1 // pred_check_branch
      %11 = sbr.rel (0) target = $region9
    $region8: #{tpu_custom_call.1} parent=1 // pred_region
      _
    $region9: #{tpu_custom_call.1} parent=1 // pred_fallthru
      _
    %v12 = vld [vmem:[%s0] sm:$0xff]
    %v13 = vld [vmem:[%s1] sm:$0xff]
    %vm14 = vcmask 261120
    %v15 = vsel %vm14, %v12, -inf
    %16 = vmax.xlane.f32.xlu0 %v15
    %v17 = vpop.xlane.xlu0 %16
    %v18 = vsub.f32 %v12, %v17
    %v19 = vmul.f32 %v18, 1.442695
    %v20 = vpow.pop %v19
    %v21 = vsel %vm14, %v20, 0.0
    %22 = vadd.xlane.f32.xlu0 %v21
    %v23 = vpop.xlane.xlu0 %22
    %v24 = vlog2.pop %v23
    %v25 = vmul.f32 %v24, 0.6931472
    %v26 = vlaneseq
    %v27 = vand.u32 %v26, 127
    %28 = vset.pattern.permute.xlu0 0
    %29 = vperm.xlu0 %28, %v13
    %v30 = vpop.permute.xlu0 %29
    %vm31 = vcmp.eq.s32.totalorder %v27, %v30
    %v32 = vsel %vm31, %v18, 0.0
    %v33 = vsel %vm14, %v32, 0.0
    %34 = vadd.xlane.f32.xlu0 %v33
    %v35 = vpop.xlane.xlu0 %34
    %v36 = vsel %vm14, %v18, 0.0
    %37 = vadd.xlane.f32.xlu0 %v36
    %v38 = vpop.xlane.xlu0 %37
    %v39 = vsub.f32 %v25, %v35
    %v40 = vmul.f32 %v38, 0.03125
    %v41 = vsub.f32 %v25, %v40
    %v42 = vmul.f32 %v39, 0.9
    %v43 = vmul.f32 %v41, 0.1
    %v44 = vadd.f32 %v42, %v43
    %v45 = vlaneseq
    %v46 = vshrl.u32 %v45, 7
    %s47 = smul.u32 0, 8
    %v48 = vstv %s47
    %v49 = vadd.s32 %v46, %v48
    %vm50 = vcmp.lt.s32.totalorder %v49, 8
    %v51 = vsel %vm50, %v44, 0.0
    %vm52 = vcmask 7168
    %v53 = vsel %vm52, %v51, 0.0
    %54 = vadd.xlane.f32.xlu0 %v53
    %v55 = vpop.xlane.xlu0 %54
    %v56 = vrot.slane %v55, 4
    %v57 = vadd.f32 %v55, %v56
    %v58 = vrot.slane %v57, 2
    %v59 = vadd.f32 %v57, %v58
    %v60 = vrot.slane %v59, 1
    %v61 = vadd.f32 %v59, %v60
    %s62 = vtos %v61
    %v63 = vstv %s62
    %64 = vst [vmem:[#allocation2] sm:$0x1] %v63
    // Predicated region
    $region10: #{tpu_custom_call.1} parent=1 // pred_check
      _
    $region11: #{tpu_custom_call.1} parent=1 // pred_check_branch
      %66 = sbr.rel (0) target = $region13
    $region12: #{tpu_custom_call.1} parent=1 // pred_region
      %s68 = ssub.s32 16, 16
      %69 = vsyncadd [#allocation3], %s68
      %s71 = sshll.u32 [#allocation2], 4
      %s72 = int_to_ptr.vmem [resolvable:$true] %s71
      %74 = dma.vmem_to_hbm [thread:$0]  %s72, 16, %s2, [#allocation3]
    $region13: #{tpu_custom_call.1} parent=1 // pred_fallthru
      _
    // Predicated region
    $region14: #{tpu_custom_call.1} parent=1 // pred_check
      _
    $region15: #{tpu_custom_call.1} parent=1 // pred_check_branch
      %76 = sbr.rel (0) target = $region17
    $region16: #{tpu_custom_call.1} parent=1 // pred_region
      %77 = dma.done [#allocation3], 16
    $region17: #{tpu_custom_call.1} parent=1 // pred_fallthru
      _
    %78 = vsyncpa [#allocation3], 1

</llo_original>
